<compile_context>
chip_gen: v7x
topology: tpu7x:2x2x1
jax: 0.10.0
libtpu: 0.0.40
codegen_flags: <defaults>
</compile_context>

<pallas_src>
import functools

import jax
import jax.numpy as jnp
from jax.experimental import pallas as pl
from jax.experimental.pallas import tpu as pltpu


def _round_up(x: int, m: int) -> int:
    return ((x + m - 1) // m) * m


def _pick_tile(b_pad: int, block_batch: int) -> int:
    """Largest multiple of 8 that is <= block_batch and divides b_pad."""
    cap = min(block_batch, b_pad)
    cap -= cap % 8
    for cand in range(cap, 7, -8):
        if b_pad % cand == 0:
            return cand
    return 8  # b_pad is always a multiple of 8


def decoder_kernel(x_ref, w1_ref, b1_ref, w2_ref, b2_ref, o_ref):
    # linear1 + sigmoid (hidden_activ)
    h = jnp.dot(x_ref[...], w1_ref[...], preferred_element_type=jnp.float32)
    h = jax.nn.sigmoid(h + b1_ref[...])          # (TB, 20) + (1, 20) broadcast
    # linear2 (no output activation in the Decoder)
    y = jnp.dot(h, w2_ref[...], preferred_element_type=jnp.float32)
    o_ref[...] = (y + b2_ref[...]).astype(o_ref.dtype)


@functools.partial(jax.jit, static_argnames=("block_batch",))
def decoder_forward(x, w1_t, b1, w2_t, b2, *, block_batch=4096):
    """Decoder forward.

    x    : (B, hidden_dim)  f32
    w1_t : (hidden_dim, 20) f32   (transpose of PyTorch linear1.weight)
    b1   : (1, 20)          f32
    w2_t : (20, input_dim)  f32   (transpose of PyTorch linear2.weight)
    b2   : (1, input_dim)   f32
    returns (B, input_dim)  f32
    """
    batch, hidden_dim = x.shape
    mid = w1_t.shape[1]
    out_dim = w2_t.shape[1]

    # --- minimal batch padding: only up to a multiple of 8 (sublane rule) ---
    b_pad = _round_up(batch, 8)
    if b_pad != batch:
        x = jnp.pad(x, ((0, b_pad - batch), (0, 0)))

    # --- tile size: largest multiple of 8 <= block_batch dividing b_pad -----
    tb = _pick_tile(b_pad, block_batch)
    n_blocks = b_pad // tb

    flops = 2 * b_pad * (hidden_dim * mid + mid * out_dim)
    transcendentals = b_pad * mid  # sigmoid
    bytes_accessed = 4 * (
        b_pad * hidden_dim            # x
        + hidden_dim * mid + mid      # W1, b1
        + mid * out_dim + out_dim     # W2, b2
        + b_pad * out_dim             # out
    )

    out = pl.pallas_call(
        decoder_kernel,
        out_shape=jax.ShapeDtypeStruct((b_pad, out_dim), jnp.float32),
        grid=(n_blocks,),
        in_specs=[
            pl.BlockSpec((tb, hidden_dim), lambda i: (i, 0)),    # x tile
            pl.BlockSpec((hidden_dim, mid), lambda i: (0, 0)),   # W1 (resident)
            pl.BlockSpec((1, mid), lambda i: (0, 0)),            # b1 (resident)
            pl.BlockSpec((mid, out_dim), lambda i: (0, 0)),      # W2 (resident)
            pl.BlockSpec((1, out_dim), lambda i: (0, 0)),        # b2 (resident)
        ],
        # Output block's last dim equals the full array dim -> legal unpadded
        # store; no lane padding, no wrapper slice pass.
        out_specs=pl.BlockSpec((tb, out_dim), lambda i: (i, 0)),
        compiler_params=pltpu.CompilerParams(
            dimension_semantics=("parallel",),
        ),
        cost_estimate=pl.CostEstimate(
            flops=flops,
            transcendentals=transcendentals,
            bytes_accessed=bytes_accessed,
        ),
    )(x, w1_t, b1, w2_t, b2)

    if b_pad != batch:
        out = out[:batch]
    return out


def init_linear_params(key, in_features, out_features):
    """Deterministic init mimicking PyTorch nn.Linear default:
    U(-1/sqrt(in), 1/sqrt(in)) for both weight and bias."""
    k_w, k_b = jax.random.split(key)
    bound = 1.0 / jnp.sqrt(jnp.float32(in_features))
    # PyTorch weight is (out, in); we store the transpose (in, out) for the kernel.
    w_t = jax.random.uniform(
        k_w, (in_features, out_features), jnp.float32, minval=-bound, maxval=bound
    )
    b = jax.random.uniform(
        k_b, (1, out_features), jnp.float32, minval=-bound, maxval=bound
    )
    return w_t, b


if __name__ == "__main__":
    # Decoder(hidden_dim, input_dim): hidden_dim -> 20 -> input_dim
    hidden_dim = 16   # decoder input width (latent)
    input_dim = 32    # decoder output width (reconstruction)
    batch = 8

    key = jax.random.PRNGKey(0)
    k_x, k_l1, k_l2 = jax.random.split(key, 3)

    x = jax.random.normal(k_x, (batch, hidden_dim), jnp.float32)
    w1_t, b1 = init_linear_params(k_l1, hidden_dim, 20)
    w2_t, b2 = init_linear_params(k_l2, 20, input_dim)

    out = decoder_forward(x, w1_t, b1, w2_t, b2)
    out = jax.block_until_ready(out)

    # Pure-JAX reference of the same math (no output activation).
    ref = jax.nn.sigmoid(x @ w1_t + b1) @ w2_t + b2
    assert out.shape == (batch, input_dim)
    assert jnp.allclose(out, ref, atol=1e-4, rtol=1e-4)

    print("KERNEL_OK")
</pallas_src>

<mosaic_0001>
module attributes {stable_mosaic.version = 11 : i64} {
  func.func @decoder_kernel(%arg0: i32, %arg1: memref<8x16xf32, #tpu.memory_space<vmem>>, %arg2: memref<16x20xf32, #tpu.memory_space<vmem>>, %arg3: memref<1x20xf32, #tpu.memory_space<vmem>>, %arg4: memref<20x32xf32, #tpu.memory_space<vmem>>, %arg5: memref<1x32xf32, #tpu.memory_space<vmem>>, %arg6: memref<8x32xf32, #tpu.memory_space<vmem>>) attributes {dimension_semantics = [#tpu.dimension_semantics<parallel>], iteration_bounds = array<i64: 1>, scalar_prefetch = 0 : i64, scratch_operands = 0 : i64, tpu.core_type = #tpu.core_type<tc>, window_params = [{transform_indices = @transform_0, window_bounds = array<i64: 8, 16>}, {pipeline_mode = #tpu.pipeline_mode<synchronous>, transform_indices = @transform_1, window_bounds = array<i64: 16, 20>}, {pipeline_mode = #tpu.pipeline_mode<synchronous>, transform_indices = @transform_2, window_bounds = array<i64: 1, 20>}, {pipeline_mode = #tpu.pipeline_mode<synchronous>, transform_indices = @transform_3, window_bounds = array<i64: 20, 32>}, {pipeline_mode = #tpu.pipeline_mode<synchronous>, transform_indices = @transform_4, window_bounds = array<i64: 1, 32>}, {transform_indices = @transform_5, window_bounds = array<i64: 8, 32>}]} {
    %c0 = arith.constant 0 : index
    %c0_0 = arith.constant 0 : index
    %0 = vector.load %arg1[%c0, %c0_0] : memref<8x16xf32, #tpu.memory_space<vmem>>, vector<8x16xf32>
    %c0_1 = arith.constant 0 : index
    %c0_2 = arith.constant 0 : index
    %1 = vector.load %arg2[%c0_1, %c0_2] : memref<16x20xf32, #tpu.memory_space<vmem>>, vector<16x20xf32>
    %cst = arith.constant dense<0.000000e+00> : vector<8x20xf32>
    %2 = tpu.matmul %0, %1, %cst {dimension_numbers = #tpu.dot_dimension_numbers<[1], [0], [0], [1], [0, 0, 1, 1], [], []>} : vector<8x16xf32>, vector<16x20xf32>, vector<8x20xf32> -> vector<8x20xf32>
    %c0_3 = arith.constant 0 : index
    %c0_4 = arith.constant 0 : index
    %3 = vector.load %arg3[%c0_3, %c0_4] : memref<1x20xf32, #tpu.memory_space<vmem>>, vector<1x20xf32>
    %4 = vector.broadcast %3 : vector<1x20xf32> to vector<8x20xf32>
    %5 = arith.addf %2, %4 : vector<8x20xf32>
    %6 = arith.negf %5 : vector<8x20xf32>
    %7 = math.exp %6 : vector<8x20xf32>
    %cst_5 = arith.constant 1.000000e+00 : f32
    %8 = vector.broadcast %cst_5 : f32 to vector<8x20xf32>
    %9 = arith.addf %8, %7 : vector<8x20xf32>
    %10 = arith.divf %8, %9 : vector<8x20xf32>
    %c0_6 = arith.constant 0 : index
    %c0_7 = arith.constant 0 : index
    %11 = vector.load %arg4[%c0_6, %c0_7] : memref<20x32xf32, #tpu.memory_space<vmem>>, vector<20x32xf32>
    %cst_8 = arith.constant dense<0.000000e+00> : vector<8x32xf32>
    %12 = tpu.matmul %10, %11, %cst_8 {dimension_numbers = #tpu.dot_dimension_numbers<[1], [0], [0], [1], [0, 0, 1, 1], [], []>} : vector<8x20xf32>, vector<20x32xf32>, vector<8x32xf32> -> vector<8x32xf32>
    %c0_9 = arith.constant 0 : index
    %c0_10 = arith.constant 0 : index
    %13 = vector.load %arg5[%c0_9, %c0_10] : memref<1x32xf32, #tpu.memory_space<vmem>>, vector<1x32xf32>
    %14 = vector.broadcast %13 : vector<1x32xf32> to vector<8x32xf32>
    %15 = arith.addf %12, %14 : vector<8x32xf32>
    %c0_11 = arith.constant 0 : index
    %c0_12 = arith.constant 0 : index
    %16 = vector.load %arg6[%c0_11, %c0_12] : memref<8x32xf32, #tpu.memory_space<vmem>>, vector<8x32xf32>
    tpu.vector_store %arg6[%c0_11, %c0_12], %15 {strides = array<i32>} : memref<8x32xf32, #tpu.memory_space<vmem>>, vector<8x32xf32>,
    return
  }
  func.func @transform_0(%arg0: i32) -> (i32, i32) {
    %c0_i32 = arith.constant 0 : i32
    %c0_i32_0 = arith.constant 0 : i32
    return %arg0, %c0_i32 : i32, i32
  }
  func.func @transform_1(%arg0: i32) -> (i32, i32) {
    %c0_i32 = arith.constant 0 : i32
    %c0_i32_0 = arith.constant 0 : i32
    %c0_i32_1 = arith.constant 0 : i32
    return %c0_i32, %c0_i32_0 : i32, i32
  }
  func.func @transform_2(%arg0: i32) -> (i32, i32) {
    %c0_i32 = arith.constant 0 : i32
    %c0_i32_0 = arith.constant 0 : i32
    %c0_i32_1 = arith.constant 0 : i32
    return %c0_i32, %c0_i32_0 : i32, i32
  }
  func.func @transform_3(%arg0: i32) -> (i32, i32) {
    %c0_i32 = arith.constant 0 : i32
    %c0_i32_0 = arith.constant 0 : i32
    %c0_i32_1 = arith.constant 0 : i32
    return %c0_i32, %c0_i32_0 : i32, i32
  }
  func.func @transform_4(%arg0: i32) -> (i32, i32) {
    %c0_i32 = arith.constant 0 : i32
    %c0_i32_0 = arith.constant 0 : i32
    %c0_i32_1 = arith.constant 0 : i32
    return %c0_i32, %c0_i32_0 : i32, i32
  }
  func.func @transform_5(%arg0: i32) -> (i32, i32) {
    %c0_i32 = arith.constant 0 : i32
    %c0_i32_0 = arith.constant 0 : i32
    return %arg0, %c0_i32 : i32, i32
  }
}

</mosaic_0001>

<llo_original>
// kernel: decoder_forward.1
$region0: #{decoder_forward.1}
  #allocation0 [shape = 'u32[]', space=smem, size = 0x4, offset = 0x4, fixed_abs, tag = 'smem constant byte address 0x4 - core index']
  #allocation1 [shape = 'u32[144,128]{1,0:T(1,128)}', space=vmem, size = 0x12000, scoped, tag = 'internal scratch']
  %s0 = inlined_call_operand.hbm [shape: f32[8,16], index: 0, kind: input, shape index: {}]
  %s1 = inlined_call_operand.hbm [shape: f32[16,20], index: 1, kind: input, shape index: {}]
  %s2 = inlined_call_operand.vmem [shape: f32[1,20], index: 2, kind: input, shape index: {}]
  %s3 = inlined_call_operand.hbm [shape: f32[20,32], index: 3, kind: input, shape index: {}]
  %s4 = inlined_call_operand.vmem [shape: f32[1,32], index: 4, kind: input, shape index: {}]
  %s5 = inlined_call_operand.hbm [shape: f32[8,32], index: 5, kind: output, shape index: {}]
  %s6 = sld [smem:[#allocation0]]
  $region42: #{decoder_forward.1} parent=0
    _
  %s8 = ssub.s32 1, %s6
  %s9 = scalar_select 0, %s8, %s6
  $region1: #{decoder_forward.1} parent=0
    #allocation2 [shape = 'u8[4096]{0}', space=vmem, size = 0x1000, scoped, tag = 'input window, operand 0, single buffered']
    #allocation3 [shape = 's32[1]{0}', space=sflag, size = 0x4, scoped, tag = 'scoped memory for decoder_forward.1']
    #allocation4 [shape = 's32[1]{0}', space=sflag, size = 0x4, scoped, tag = 'scoped memory for decoder_forward.1']
    #allocation5 [shape = 'u8[8192]{0}', space=vmem, size = 0x2000, scoped, tag = 'input window, operand 1, single buffered']
    #allocation6 [shape = 's32[1]{0}', space=sflag, size = 0x4, scoped, tag = 'scoped memory for decoder_forward.1']
    #allocation7 [shape = 'u8[12288]{0}', space=vmem, size = 0x3000, scoped, tag = 'input window, operand 3, single buffered']
    #allocation8 [shape = 'u8[4096]{0}', space=vmem, size = 0x1000, scoped, tag = 'output window, operand 0, single buffered']
    %10 = vsyncpa [#allocation3], 0
    %11 = vsyncpa [#allocation6], 0
    %12 = vsyncpa [#allocation4], 0
    // Predicated region
    $region2: #{decoder_forward.1} parent=1 // pred_check
      _
    $region3: #{decoder_forward.1} parent=1 // pred_check_branch
      %14 = sbr.rel (0) target = $region5
    $region4: #{decoder_forward.1} parent=1 // pred_region
      %s16 = ssub.s32 128, 128
      %17 = vsyncadd [#allocation3], %s16
      %s19 = sshll.u32 [#allocation2], 4
      %s20 = int_to_ptr.vmem [resolvable:$true] %s19
      %22 = dma.hbm_to_vmem [thread:$0]  %s0, 128, %s20, [#allocation3]
    $region5: #{decoder_forward.1} parent=1 // pred_fallthru
      _
    // Predicated region
    $region6: #{decoder_forward.1} parent=1 // pred_check
      _
    $region7: #{decoder_forward.1} parent=1 // pred_check_branch
      %24 = sbr.rel (0) target = $region9
    $region8: #{decoder_forward.1} parent=1 // pred_region
      %s26 = ssub.s32 256, 256
      %27 = vsyncadd [#allocation6], %s26
      %s28 = sshll.u32 [#allocation5], 4
      %s29 = int_to_ptr.vmem [resolvable:$true] %s28
      %34 = dma.hbm_to_vmem [thread:$0]  %s1, 256, %s29, [#allocation6], 128, 128, 8
    $region9: #{decoder_forward.1} parent=1 // pred_fallthru
      _
    // Predicated region
    $region10: #{decoder_forward.1} parent=1 // pred_check
      _
    $region11: #{decoder_forward.1} parent=1 // pred_check_branch
      %36 = sbr.rel (0) target = $region13
    $region12: #{decoder_forward.1} parent=1 // pred_region
      _
    $region13: #{decoder_forward.1} parent=1 // pred_fallthru
      _
    // Predicated region
    $region14: #{decoder_forward.1} parent=1 // pred_check
      _
    $region15: #{decoder_forward.1} parent=1 // pred_check_branch
      %38 = sbr.rel (0) target = $region17
    $region16: #{decoder_forward.1} parent=1 // pred_region
      %s40 = ssub.s32 384, 384
      %41 = vsyncadd [#allocation6], %s40
      %s42 = sshll.u32 [#allocation7], 4
      %s43 = int_to_ptr.vmem [resolvable:$true] %s42
      %48 = dma.hbm_to_vmem [thread:$0]  %s3, 384, %s43, [#allocation6], 128, 128, 8
    $region17: #{decoder_forward.1} parent=1 // pred_fallthru
      _
    // Predicated region
    $region18: #{decoder_forward.1} parent=1 // pred_check
      _
    $region19: #{decoder_forward.1} parent=1 // pred_check_branch
      %50 = sbr.rel (0) target = $region21
    $region20: #{decoder_forward.1} parent=1 // pred_region
      _
    $region21: #{decoder_forward.1} parent=1 // pred_fallthru
      _
    // Predicated region
    $region22: #{decoder_forward.1} parent=1 // pred_check
      _
    $region23: #{decoder_forward.1} parent=1 // pred_check_branch
      %52 = sbr.rel (0) target = $region25
    $region24: #{decoder_forward.1} parent=1 // pred_region
      %53 = dma.done [#allocation3], 128
    $region25: #{decoder_forward.1} parent=1 // pred_fallthru
      _
    // Predicated region
    $region26: #{decoder_forward.1} parent=1 // pred_check
      _
    $region27: #{decoder_forward.1} parent=1 // pred_check_branch
      %55 = sbr.rel (0) target = $region29
    $region28: #{decoder_forward.1} parent=1 // pred_region
      %56 = dma.done [#allocation6], 256
    $region29: #{decoder_forward.1} parent=1 // pred_fallthru
      _
    // Predicated region
    $region30: #{decoder_forward.1} parent=1 // pred_check
      _
    $region31: #{decoder_forward.1} parent=1 // pred_check_branch
      %58 = sbr.rel (0) target = $region33
    $region32: #{decoder_forward.1} parent=1 // pred_region
      %59 = dma.done [#allocation6], 384
    $region33: #{decoder_forward.1} parent=1 // pred_fallthru
      _
    %v60 = vld [vmem:[#allocation2] sm:$0xff]
    %v61 = vld [vmem:[#allocation5] sm:$0xff]
    %v62 = vld [vmem:[#allocation5 + $0x8] sm:$0xff]
    %v63 = vld [vmem:[%s2] sm:$0x1]
    %v65 = vlaneseq
    %v66 = vshrl.u32 %v65, 7
    %v67 = vsub.s32 0, %v66
    %v68 = vrot.slane %v63, %v67
    %vm70 = vcmask 130048
    %v72 = vsel %vm70, %v60, 0
    %74 = vmatprep.subr.mxu0 0.0
    %75 = vmatpush1.msra.mxu0 %v61
    %76 = vmatprep.subr.mxu0 0.0
    %77 = vmatpush1.msra.mxu0 %v62
    %78 = vmatprep.subr.mxu0 0.0
    %79 = vmatpush1.msra.mxu0 0.0
    %80 = vmatprep.subr.mxu0 0.0
    %81 = vmatpush1.msra.mxu0 0.0
    %82 = vmatprep.subr.mxu0 0.0
    %83 = vmatpush1.msra.mxu0 0.0
    %84 = vmatprep.subr.mxu0 0.0
    %85 = vmatpush1.msra.mxu0 0.0
    %86 = vmatprep.subr.mxu0 0.0
    %87 = vmatpush1.msra.mxu0 0.0
    %88 = vmatprep.subr.mxu0 0.0
    %89 = vmatpush1.msra.mxu0 0.0
    %90 = vmatprep.subr.mxu0 0.0
    %91 = vmatpush1.msra.mxu0 0.0
    %92 = vmatprep.subr.mxu0 0.0
    %93 = vmatpush1.msra.mxu0 0.0
    %94 = vmatprep.subr.mxu0 0.0
    %95 = vmatpush1.msra.mxu0 0.0
    %96 = vmatprep.subr.mxu0 0.0
    %97 = vmatpush1.msra.mxu0 0.0
    %98 = vmatprep.subr.mxu0 0.0
    %99 = vmatpush1.msra.mxu0 0.0
    %100 = vmatprep.subr.mxu0 0.0
    %101 = vmatpush1.msra.mxu0 0.0
    %102 = vmatprep.subr.mxu0 0.0
    %103 = vmatpush1.msra.mxu0 0.0
    %104 = vmatprep.subr.mxu0 0.0
    %105 = vmatpush1.msra.mxu0 0.0
    %106 = vmatprep.subr.mxu0 0.0
    %107 = vmatpush1.msra.mxu0 0.0
    %108 = vmatprep.subr.mxu0 0.0
    %109 = vmatpush1.msra.mxu0 0.0
    %110 = vmatprep.subr.mxu0 0.0
    %111 = vmatpush1.msra.mxu0 0.0
    %112 = vmatprep.subr.mxu0 0.0
    %113 = vmatpush1.msra.mxu0 0.0
    %114 = vmatprep.subr.mxu0 0.0
    %115 = vmatpush1.msra.mxu0 0.0
    %116 = vmatprep.subr.mxu0 0.0
    %117 = vmatpush1.msra.mxu0 0.0
    %118 = vmatprep.subr.mxu0 0.0
    %119 = vmatpush1.msra.mxu0 0.0
    %120 = vmatprep.subr.mxu0 0.0
    %121 = vmatpush1.msra.mxu0 0.0
    %122 = vmatprep.subr.mxu0 0.0
    %123 = vmatpush1.msra.mxu0 0.0
    %124 = vmatprep.subr.mxu0 0.0
    %125 = vmatpush1.msra.mxu0 0.0
    %126 = vmatprep.subr.mxu0 0.0
    %127 = vmatpush1.msra.mxu0 0.0
    %128 = vmatprep.subr.mxu0 0.0
    %129 = vmatpush1.msra.mxu0 0.0
    %130 = vmatprep.subr.mxu0 0.0
    %131 = vmatpush1.msra.mxu0 0.0
    %132 = vmatprep.subr.mxu0 0.0
    %133 = vmatpush1.msra.mxu0 0.0
    %134 = vmatprep.subr.mxu0 0.0
    %135 = vmatpush1.msra.mxu0 0.0
    %136 = vmatprep.subr.mxu0 0.0
    %137 = vmatpush1.msra.mxu0 0.0
    %138 = vmatprep.mubr.f32.mxu0 0.0
    %139 = vmatmul.mubr.f32.gmra.mrb[0].mxu0 %v72
    %v140 = vpop.f32.mrb[0].mxu0
    %v141 = vadd.f32 %v68, %v140
    %v142 = vpop.f32.mrb[0].mxu0
    %143 = vdwg.mxu0
    %v144 = vxor.u32 %v141, 2147483648
    %v145 = vmul.f32 %v144, 1.442695
    %v146 = vpow.pop %v145
    %v147 = vadd.f32 %v146, 1.0
    %v148 = vrcp.pop %v147
    %v149 = vmul.f32 1.0, %v148
    %v150 = vld [vmem:[#allocation7] sm:$0xff]
    %v151 = vld [vmem:[#allocation7 + $0x8] sm:$0xff]
    %v152 = vld [vmem:[#allocation7 + $0x10] sm:$0xf]
    %v153 = vld [vmem:[%s4] sm:$0x1]
    %v155 = vlaneseq
    %v156 = vshrl.u32 %v155, 7
    %v157 = vsub.s32 0, %v156
    %v158 = vrot.slane %v153, %v157
    %vm160 = vcmask 162816
    %v162 = vsel %vm160, %v149, 0
    %vm164 = vcmask 1043456
    %v166 = vsel %vm164, %v152, 0
    %168 = vmatprep.subr.mxu0 0.0
    %169 = vmatpush1.msra.mxu0 %v150
    %170 = vmatprep.subr.mxu0 0.0
    %171 = vmatpush1.msra.mxu0 %v151
    %172 = vmatprep.subr.mxu0 0.0
    %173 = vmatpush1.msra.mxu0 %v166
    %174 = vmatprep.subr.mxu0 0.0
    %175 = vmatpush1.msra.mxu0 0.0
    %176 = vmatprep.subr.mxu0 0.0
    %177 = vmatpush1.msra.mxu0 0.0
    %178 = vmatprep.subr.mxu0 0.0
    %179 = vmatpush1.msra.mxu0 0.0
    %180 = vmatprep.subr.mxu0 0.0
    %181 = vmatpush1.msra.mxu0 0.0
    %182 = vmatprep.subr.mxu0 0.0
    %183 = vmatpush1.msra.mxu0 0.0
    %184 = vmatprep.subr.mxu0 0.0
    %185 = vmatpush1.msra.mxu0 0.0
    %186 = vmatprep.subr.mxu0 0.0
    %187 = vmatpush1.msra.mxu0 0.0
    %188 = vmatprep.subr.mxu0 0.0
    %189 = vmatpush1.msra.mxu0 0.0
    %190 = vmatprep.subr.mxu0 0.0
    %191 = vmatpush1.msra.mxu0 0.0
    %192 = vmatprep.subr.mxu0 0.0
    %193 = vmatpush1.msra.mxu0 0.0
    %194 = vmatprep.subr.mxu0 0.0
    %195 = vmatpush1.msra.mxu0 0.0
    %196 = vmatprep.subr.mxu0 0.0
    %197 = vmatpush1.msra.mxu0 0.0
    %198 = vmatprep.subr.mxu0 0.0
    %199 = vmatpush1.msra.mxu0 0.0
    %200 = vmatprep.subr.mxu0 0.0
    %201 = vmatpush1.msra.mxu0 0.0
    %202 = vmatprep.subr.mxu0 0.0
    %203 = vmatpush1.msra.mxu0 0.0
    %204 = vmatprep.subr.mxu0 0.0
    %205 = vmatpush1.msra.mxu0 0.0
    %206 = vmatprep.subr.mxu0 0.0
    %207 = vmatpush1.msra.mxu0 0.0
    %208 = vmatprep.subr.mxu0 0.0
    %209 = vmatpush1.msra.mxu0 0.0
    %210 = vmatprep.subr.mxu0 0.0
    %211 = vmatpush1.msra.mxu0 0.0
    %212 = vmatprep.subr.mxu0 0.0
    %213 = vmatpush1.msra.mxu0 0.0
    %214 = vmatprep.subr.mxu0 0.0
    %215 = vmatpush1.msra.mxu0 0.0
    %216 = vmatprep.subr.mxu0 0.0
    %217 = vmatpush1.msra.mxu0 0.0
    %218 = vmatprep.subr.mxu0 0.0
    %219 = vmatpush1.msra.mxu0 0.0
    %220 = vmatprep.subr.mxu0 0.0
    %221 = vmatpush1.msra.mxu0 0.0
    %222 = vmatprep.subr.mxu0 0.0
    %223 = vmatpush1.msra.mxu0 0.0
    %224 = vmatprep.subr.mxu0 0.0
    %225 = vmatpush1.msra.mxu0 0.0
    %226 = vmatprep.subr.mxu0 0.0
    %227 = vmatpush1.msra.mxu0 0.0
    %228 = vmatprep.subr.mxu0 0.0
    %229 = vmatpush1.msra.mxu0 0.0
    %230 = vmatprep.subr.mxu0 0.0
    %231 = vmatpush1.msra.mxu0 0.0
    %232 = vmatprep.mubr.f32.mxu0 0.0
    %233 = vmatmul.mubr.f32.gmra.mrb[0].mxu0 %v162
    %v234 = vpop.f32.mrb[0].mxu0
    %v235 = vadd.f32 %v158, %v234
    %v236 = vpop.f32.mrb[0].mxu0
    %237 = vdwg.mxu0
    %vm238 = vcmask 261120
    %239 = vst.msk [vmem:[#allocation8] sm:$0xff] %vm238, %v235
    // Predicated region
    $region34: #{decoder_forward.1} parent=1 // pred_check
      _
    $region35: #{decoder_forward.1} parent=1 // pred_check_branch
      %241 = sbr.rel (0) target = $region37
    $region36: #{decoder_forward.1} parent=1 // pred_region
      %s243 = ssub.s32 128, 128
      %244 = vsyncadd [#allocation4], %s243
      %s246 = sshll.u32 [#allocation8], 4
      %s247 = int_to_ptr.vmem [resolvable:$true] %s246
      %249 = dma.vmem_to_hbm [thread:$0]  %s247, 128, %s5, [#allocation4]
    $region37: #{decoder_forward.1} parent=1 // pred_fallthru
      _
    // Predicated region
    $region38: #{decoder_forward.1} parent=1 // pred_check
      _
    $region39: #{decoder_forward.1} parent=1 // pred_check_branch
      %251 = sbr.rel (0) target = $region41
    $region40: #{decoder_forward.1} parent=1 // pred_region
      %252 = dma.done [#allocation4], 128
    $region41: #{decoder_forward.1} parent=1 // pred_fallthru
      _
    %253 = vsyncpa [#allocation3], 1
    %254 = vsyncpa [#allocation6], 1
    %255 = vsyncpa [#allocation4], 1

</llo_original>
